<compile_context>
chip_gen: v6e
topology: v6e:2x2x1
jax: 0.10.0
libtpu: 0.0.40
codegen_flags: <defaults>
</compile_context>

<pallas_src>
import numpy as np
import jax
import jax.numpy as jnp
from jax.experimental import pallas as pl
from jax.experimental.pallas import tpu as pltpu

_LANE = 128
_SUBLANE = 8


def _round_up(x, m):
    return ((x + m - 1) // m) * m


def _vmem_capacity_bytes():
    try:
        cap = getattr(pltpu.get_tpu_info(), "vmem_capacity_bytes", None)
        if cap:
            return int(cap)
    except Exception:
        pass
    return 64 * 1024 * 1024  # conservative (v7x-sized) fallback


_VMEM_CAP = _vmem_capacity_bytes()
# ~48 MiB on v7x (64 MiB physical), ~96 MiB on v5e/v6e (128 MiB physical).
_VMEM_LIMIT = min((_VMEM_CAP * 3) // 4, 100 * 1024 * 1024)
# Bigger lane tiles where VMEM is generous (v5e/v6e), tighter on v7x.
_LANE_TILE_TARGET = 2048 if _VMEM_CAP >= 100 * 1024 * 1024 else 1024


def _largest_divisor_tile(total, unit, cap):
    """Largest multiple-of-`unit` divisor of `total` that is <= cap (0 if none)."""
    if total <= 0 or total % unit:
        return 0
    q = total // unit
    cap_q = max(0, cap // unit)
    best = 0
    d = 1
    while d * d <= q:
        if q % d == 0:
            for cand in (d, q // d):
                if cand <= cap_q and cand > best:
                    best = cand
        d += 1
    return best * unit


def _spec(shape, index_map, buffer_count=None):
    """BlockSpec with optional deeper pipelining (graceful fallback)."""
    if buffer_count is not None:
        try:
            return pl.BlockSpec(shape, index_map, pipeline_mode=pl.Buffered(buffer_count))
        except TypeError:
            pass
    return pl.BlockSpec(shape, index_map)


# ---------------------------------------------------------------------------
# Kernel 1: fused elementwise  out = relu(x + residual)   (lane-dense slab)
# ---------------------------------------------------------------------------
def _add_relu_kernel(x_ref, r_ref, o_ref):
    o_ref[...] = jnp.maximum(x_ref[...] + r_ref[...], 0.0).astype(o_ref.dtype)


def add_relu(x, residual, *, target_block_rows=4096):
    # Mirrors `x += residual; x = relu(x)` — same shape constraint as PyTorch.
    assert x.shape == residual.shape and x.dtype == residual.dtype, (
        "x += residual requires matching shapes/dtypes (same constraint as PyTorch)")
    orig_shape = x.shape
    total = x.size

    block_rows = 0
    if total % (_SUBLANE * _LANE) == 0:
        rows = total // _LANE
        cap = min(target_block_rows, rows)
        if rows >= 2 * _SUBLANE:          # leave >=2 parallel grid steps (v7x has 2 TCs)
            cap = min(cap, rows // 2)
        cap = max(cap, _SUBLANE)
        br = _largest_divisor_tile(rows, _SUBLANE, cap)
        if br and br * 16 >= cap:         # factorization good enough -> no padding copy
            block_rows, rows_pad = br, rows
            x2 = x.reshape(rows, _LANE)           # contiguous NCHW -> free reshape
            r2 = residual.reshape(rows, _LANE)

    if block_rows == 0:
        # TODO(synk): ragged / poorly-factorable element counts fall back to a padded
        #             slab (one extra copy per operand); aligned CNN shapes never hit this.
        rows8 = _round_up(pl.cdiv(total, _LANE), _SUBLANE)
        block_rows = min(target_block_rows, rows8)
        rows_pad = _round_up(rows8, block_rows)
        pad = rows_pad * _LANE - total

        def to_slab(a):
            return jnp.pad(a.reshape(-1), (0, pad)).reshape(rows_pad, _LANE)

        x2, r2 = to_slab(x), to_slab(residual)

    out2 = pl.pallas_call(
        _add_relu_kernel,
        out_shape=jax.ShapeDtypeStruct((rows_pad, _LANE), x.dtype),
        grid=(rows_pad // block_rows,),
        in_specs=[
            pl.BlockSpec((block_rows, _LANE), lambda i: (i, 0)),
            pl.BlockSpec((block_rows, _LANE), lambda i: (i, 0)),
        ],
        out_specs=pl.BlockSpec((block_rows, _LANE), lambda i: (i, 0)),
        input_output_aliases={0: 0},  # mirrors in-place `x += residual`
        compiler_params=pltpu.CompilerParams(
            dimension_semantics=("parallel",),
            vmem_limit_bytes=_VMEM_LIMIT,
        ),
    )(x2, r2)
    return out2.reshape(-1)[:total].reshape(orig_shape)


# ---------------------------------------------------------------------------
# Kernel 2: shortcut = BatchNorm(conv1x1(x, stride))  as one batched matmul,
#           BN folded into (scaled weights, bias);  optional fused add+ReLU.
# ---------------------------------------------------------------------------
def _shortcut_kernel(x_ref, w_ref, bias_ref, o_ref):
    # y = (scale*W) @ x + bias     (BN scale folded into W in the wrapper)
    y = jnp.dot(w_ref[...], x_ref[...], preferred_element_type=jnp.float32)
    o_ref[...] = (y + bias_ref[...]).astype(o_ref.dtype)


def _shortcut_fused_kernel(x_ref, w_ref, bias_ref, skip_ref, o_ref):
    y = jnp.dot(w_ref[...], x_ref[...], preferred_element_type=jnp.float32)
    y = y + bias_ref[...] + skip_ref[...].astype(jnp.float32)   # skip streamed bf16, add f32
    o_ref[...] = jnp.maximum(y, 0.0).astype(o_ref.dtype)


def shortcut_conv1x1_bn(x, w, gamma, beta, running_mean, running_var, *,
                        stride=1, eps=1e-5, skip=None, lane_tile=None,
                        nchw_out=True):
    """nn.Conv2d(k=1, stride, bias=False) + nn.BatchNorm2d (inference stats).

    If `skip` (NCHW, shape of the conv output) is given, relu(out + skip) is fused
    into the same kernel (no extra HBM round trip); skip is streamed in bf16.
    With nchw_out=False the batched-slab path returns (C_exp, N*Hs*Ws), sparing the
    output-side transpose for consumers that accept that layout.
    """
    # TODO(synk): training-mode BatchNorm (batch statistics + running-stat updates)
    #             is not implemented; inference running stats are used.
    N, C_in, H, W = x.shape
    w2d = w.reshape(w.shape[0], -1)              # accept (C_exp,C_in) or (C_exp,C_in,1,1)
    C_exp = w2d.shape[0]

    # Fold BN: y = (gamma/std) * (W @ x) + (beta - mean*gamma/std)
    inv_std = jax.lax.rsqrt(running_var.astype(jnp.float32) + eps)
    scale = gamma.astype(jnp.float32) * inv_std                            # [C_exp]
    bias2d = (beta.astype(jnp.float32)
              - running_mean.astype(jnp.float32) * scale).reshape(C_exp, 1)
    w_scaled = (w2d.astype(jnp.float32) * scale[:, None]).astype(jnp.bfloat16)

    # Strided 1x1 conv == spatial subsample.  Cast to bf16 BEFORE any layout glue
    # so any glue copy moves half the bytes (and the MXU wants bf16 anyway).
    xs = (x if stride == 1 else x[:, :, ::stride, ::stride]).astype(jnp.bfloat16)
    Hs, Ws = xs.shape[2], xs.shape[3]
    Lp = Hs * Ws
    L = N * Lp

    lt_target = lane_tile or _LANE_TILE_TARGET
    if C_exp % _SUBLANE == 0:
        tc = _largest_divisor_tile(C_exp, _SUBLANE, min(256, C_exp)) or C_exp
    else:
        tc = C_exp                               # block == full dim (allowed)

    if skip is not None:
        assert skip.shape == (N, C_exp, Hs, Ws), "skip must match conv output shape"

    if Lp % _LANE == 0:
        # ---- Per-sample path: NO NCHW<->(C, N*H*W) transposes at all.  The
        #      per-sample (C_in, Hs*Ws) slab is a free reshape; grid over batch with
        #      a Squeezed dim; the output reshape back to NCHW is also free.
        tl = _largest_divisor_tile(Lp, _LANE, min(lt_target, Lp)) or Lp
        lane_steps = Lp // tl
        buf = 3 if (C_in < 256 and lane_steps >= 4) else None
        x3 = xs.reshape(N, C_in, Lp)
        args = [x3, w_scaled, bias2d]
        in_specs = [
            _spec((pl.Squeezed(), C_in, tl), lambda n, c, l: (n, 0, l), buf),
            pl.BlockSpec((tc, C_in), lambda n, c, l: (c, 0)),   # weights stay resident
            pl.BlockSpec((tc, 1), lambda n, c, l: (c, 0)),
        ]
        if skip is not None:
            args.append(skip.astype(jnp.bfloat16).reshape(N, C_exp, Lp))
            in_specs.append(_spec((pl.Squeezed(), tc, tl),
                                  lambda n, c, l: (n, c, l), buf))
        out3 = pl.pallas_call(
            _shortcut_fused_kernel if skip is not None else _shortcut_kernel,
            out_shape=jax.ShapeDtypeStruct((N, C_exp, Lp), x.dtype),
            grid=(N, C_exp // tc, lane_steps),
            in_specs=in_specs,
            out_specs=pl.BlockSpec((pl.Squeezed(), tc, tl), lambda n, c, l: (n, c, l)),
            compiler_params=pltpu.CompilerParams(
                dimension_semantics=("parallel", "parallel", "parallel"),
                vmem_limit_bytes=_VMEM_LIMIT,
            ),
        )(*args)
        return out3.reshape(N, C_exp, Hs, Ws)

    # ---- Batched-slab path (Hs*Ws not lane aligned): channels on sublanes, batched
    #      spatial on lanes.  The transpose copy runs at bf16 (half the bytes).
    x2d = xs.transpose(1, 0, 2, 3).reshape(C_in, L)
    tl_div = _largest_divisor_tile(L, _LANE, min(lt_target, max(L, _LANE)))
    if tl_div and tl_div * 8 >= min(lt_target, L):
        tl, L_pad = tl_div, L                    # no padding needed
    else:
        tl = min(lt_target, _round_up(L, _LANE))
        L_pad = _round_up(L, tl)
    if L_pad != L:
        x2d = jnp.pad(x2d, ((0, 0), (0, L_pad - L)))
    lane_steps = L_pad // tl
    buf = 3 if (C_in < 256 and lane_steps >= 4) else None

    args = [x2d, w_scaled, bias2d]
    in_specs = [
        _spec((C_in, tl), lambda c, l: (0, l), buf),
        pl.BlockSpec((tc, C_in), lambda c, l: (c, 0)),          # weights stay resident
        pl.BlockSpec((tc, 1), lambda c, l: (c, 0)),
    ]
    if skip is not None:
        s2d = skip.astype(jnp.bfloat16).transpose(1, 0, 2, 3).reshape(C_exp, L)
        if L_pad != L:
            s2d = jnp.pad(s2d, ((0, 0), (0, L_pad - L)))
        args.append(s2d)
        in_specs.append(_spec((tc, tl), lambda c, l: (c, l), buf))

    out2d = pl.pallas_call(
        _shortcut_fused_kernel if skip is not None else _shortcut_kernel,
        out_shape=jax.ShapeDtypeStruct((C_exp, L_pad), x.dtype),
        grid=(C_exp // tc, lane_steps),
        in_specs=in_specs,
        out_specs=pl.BlockSpec((tc, tl), lambda c, l: (c, l)),
        compiler_params=pltpu.CompilerParams(
            dimension_semantics=("parallel", "parallel"),
            vmem_limit_bytes=_VMEM_LIMIT,
        ),
    )(*args)
    out2d = out2d[:, :L]
    if not nchw_out:
        return out2d                              # (C_exp, N*Hs*Ws), no output transpose
    return out2d.reshape(C_exp, N, Hs, Ws).transpose(1, 0, 2, 3)


# ---------------------------------------------------------------------------
# ResidualBlock: parameters + forward
# ---------------------------------------------------------------------------
def init_residual_block(key, in_channels, out_channels, expansion=1, stride=1):
    expanded = out_channels * expansion
    k_w, k_g, k_b, k_m, k_v = jax.random.split(key, 5)
    bound = 1.0 / np.sqrt(in_channels)   # 1x1 conv fan-in
    return {
        # conv1x1 weight [C_exp, C_in, 1, 1] squeezed to [C_exp, C_in]
        "w": jax.random.uniform(k_w, (expanded, in_channels), jnp.float32, -bound, bound),
        "gamma": 1.0 + 0.1 * jax.random.normal(k_g, (expanded,), jnp.float32),
        "beta": 0.1 * jax.random.normal(k_b, (expanded,), jnp.float32),
        "running_mean": 0.1 * jax.random.normal(k_m, (expanded,), jnp.float32),
        "running_var": jax.random.uniform(k_v, (expanded,), jnp.float32, 0.5, 1.5),
    }


def residual_block_forward(params, x, *, in_channels, out_channels,
                           expansion=1, stride=1):
    expanded = out_channels * expansion
    residual = x
    # self.blocks = nn.Identity()
    if in_channels != expanded:
        residual = shortcut_conv1x1_bn(
            residual, params["w"], params["gamma"], params["beta"],
            params["running_mean"], params["running_var"], stride=stride)
        # NOTE: with Identity blocks this branch makes `x += residual`
        # shape-incompatible (exactly as in PyTorch).  Subclasses whose `blocks`
        # produce expanded channels should call shortcut_conv1x1_bn(..., skip=blocks_out)
        # to use the fused conv+BN+add+ReLU kernel — it removes the three full-tensor
        # HBM passes a separate add_relu would cost.
    # x += residual ; x = relu(x)
    return add_relu(x, residual)


# Pure-JAX reference (validation only) — mirrors the kernel's bf16 quantization.
def _shortcut_ref(x, w, gamma, beta, mean, var, stride, eps=1e-5, skip=None):
    xs = x[:, :, ::stride, ::stride]
    inv_std = jax.lax.rsqrt(var + eps)
    scale = gamma * inv_std
    w_s = (w * scale[:, None]).astype(jnp.bfloat16).astype(jnp.float32)
    xs = xs.astype(jnp.bfloat16).astype(jnp.float32)
    y = jnp.einsum("oc,nchw->nohw", w_s, xs, precision=jax.lax.Precision.HIGHEST)
    y = y + (beta - mean * scale)[None, :, None, None]
    if skip is not None:
        y = jnp.maximum(y + skip.astype(jnp.bfloat16).astype(jnp.float32), 0.0)
    return y


if __name__ == "__main__":
    key = jax.random.PRNGKey(0)
    k_x, k_pa, k_pb, k_pc, k_s = jax.random.split(key, 5)

    N, C, H, W = 2, 4, 16, 16
    x = jax.random.normal(k_x, (N, C, H, W), jnp.float32)

    # ---- Config A: in_channels == expanded_channels (the end-to-end-runnable
    #      configuration of this module): shortcut skipped, out = relu(x + x).
    params_a = init_residual_block(k_pa, C, C, expansion=1, stride=1)
    out_a = jax.block_until_ready(
        residual_block_forward(params_a, x, in_channels=C, out_channels=C,
                               expansion=1, stride=1))
    ref_a = jnp.maximum(x + x, 0.0)
    assert np.allclose(np.asarray(out_a), np.asarray(ref_a), atol=1e-5), "add_relu mismatch"

    in_c, out_c = 4, 8

    # ---- Config B1: stride=1 shortcut (per-sample transpose-free path, Hs*Ws=256).
    params_b = init_residual_block(k_pb, in_c, out_c, expansion=1, stride=1)
    sc1 = jax.block_until_ready(shortcut_conv1x1_bn(
        x, params_b["w"], params_b["gamma"], params_b["beta"],
        params_b["running_mean"], params_b["running_var"], stride=1))
    ref1 = _shortcut_ref(x, params_b["w"], params_b["gamma"], params_b["beta"],
                         params_b["running_mean"], params_b["running_var"], 1)
    assert np.allclose(np.asarray(sc1), np.asarray(ref1), atol=2e-3, rtol=2e-3), \
        "shortcut conv1x1+BN (stride=1) mismatch"

    skip1 = jax.random.normal(k_s, sc1.shape, jnp.float32)
    fused1 = jax.block_until_ready(shortcut_conv1x1_bn(
        x, params_b["w"], params_b["gamma"], params_b["beta"],
        params_b["running_mean"], params_b["running_var"], stride=1, skip=skip1))
    fused1_ref = _shortcut_ref(x, params_b["w"], params_b["gamma"], params_b["beta"],
                               params_b["running_mean"], params_b["running_var"], 1,
                               skip=skip1)
    assert np.allclose(np.asarray(fused1), np.asarray(fused1_ref), atol=2e-3, rtol=2e-3), \
        "fused shortcut+add+relu (stride=1) mismatch"

    # ---- Config B2: stride=2 shortcut (batched lane-slab path, Hs*Ws=64).
    params_c = init_residual_block(k_pc, in_c, out_c, expansion=1, stride=2)
    sc2 = jax.block_until_ready(shortcut_conv1x1_bn(
        x, params_c["w"], params_c["gamma"], params_c["beta"],
        params_c["running_mean"], params_c["running_var"], stride=2))
    ref2 = _shortcut_ref(x, params_c["w"], params_c["gamma"], params_c["beta"],
                         params_c["running_mean"], params_c["running_var"], 2)
    assert np.allclose(np.asarray(sc2), np.asarray(ref2), atol=2e-3, rtol=2e-3), \
        "shortcut conv1x1+BN (stride=2) mismatch"

    skip2 = jax.random.normal(k_s, sc2.shape, jnp.float32)
    fused2 = jax.block_until_ready(shortcut_conv1x1_bn(
        x, params_c["w"], params_c["gamma"], params_c["beta"],
        params_c["running_mean"], params_c["running_var"], stride=2, skip=skip2))
    fused2_ref = _shortcut_ref(x, params_c["w"], params_c["gamma"], params_c["beta"],
                               params_c["running_mean"], params_c["running_var"], 2,
                               skip=skip2)
    assert np.allclose(np.asarray(fused2), np.asarray(fused2_ref), atol=2e-3, rtol=2e-3), \
        "fused shortcut+add+relu (stride=2) mismatch"

    print("KERNEL_OK")
</pallas_src>

<mosaic_0001>
module attributes {stable_mosaic.version = 11 : i64} {
  func.func @_add_relu_kernel(%arg0: i32, %arg1: memref<8x128xf32, #tpu.memory_space<vmem>>, %arg2: memref<8x128xf32, #tpu.memory_space<vmem>>, %arg3: memref<8x128xf32, #tpu.memory_space<vmem>>) attributes {dimension_semantics = [#tpu.dimension_semantics<parallel>], iteration_bounds = array<i64: 2>, scalar_prefetch = 0 : i64, scratch_operands = 0 : i64, tpu.core_type = #tpu.core_type<tc>, window_params = [{transform_indices = @transform_0, window_bounds = array<i64: 8, 128>}, {transform_indices = @transform_1, window_bounds = array<i64: 8, 128>}, {transform_indices = @transform_2, window_bounds = array<i64: 8, 128>}]} {
    %c0 = arith.constant 0 : index
    %c0_0 = arith.constant 0 : index
    %0 = vector.load %arg1[%c0, %c0_0] : memref<8x128xf32, #tpu.memory_space<vmem>>, vector<8x128xf32>
    %c0_1 = arith.constant 0 : index
    %c0_2 = arith.constant 0 : index
    %1 = vector.load %arg2[%c0_1, %c0_2] : memref<8x128xf32, #tpu.memory_space<vmem>>, vector<8x128xf32>
    %2 = arith.addf %0, %1 : vector<8x128xf32>
    %cst = arith.constant 0.000000e+00 : f32
    %3 = vector.broadcast %cst : f32 to vector<8x128xf32>
    %4 = arith.maximumf %2, %3 : vector<8x128xf32>
    %c0_3 = arith.constant 0 : index
    %c0_4 = arith.constant 0 : index
    %5 = vector.load %arg3[%c0_3, %c0_4] : memref<8x128xf32, #tpu.memory_space<vmem>>, vector<8x128xf32>
    tpu.vector_store %arg3[%c0_3, %c0_4], %4 {strides = array<i32>} : memref<8x128xf32, #tpu.memory_space<vmem>>, vector<8x128xf32>,
    return
  }
  func.func @transform_0(%arg0: i32) -> (i32, i32) {
    %c0_i32 = arith.constant 0 : i32
    %c0_i32_0 = arith.constant 0 : i32
    return %arg0, %c0_i32 : i32, i32
  }
  func.func @transform_1(%arg0: i32) -> (i32, i32) {
    %c0_i32 = arith.constant 0 : i32
    %c0_i32_0 = arith.constant 0 : i32
    return %arg0, %c0_i32 : i32, i32
  }
  func.func @transform_2(%arg0: i32) -> (i32, i32) {
    %c0_i32 = arith.constant 0 : i32
    %c0_i32_0 = arith.constant 0 : i32
    return %arg0, %c0_i32 : i32, i32
  }
}

</mosaic_0001>

<llo_original>
// kernel: tpu_custom_call.1
$region0: #{tpu_custom_call.1}
  #allocation0 [shape = 'u32[]', space=smem, size = 0x4, offset = 0x4, fixed_abs, tag = 'smem constant byte address 0x4 - core index']
  #allocation1 [shape = 'u32[144,128]{1,0:T(1,128)}', space=vmem, size = 0x12000, scoped, tag = 'internal scratch']
  %s0 = inlined_call_operand.hbm [shape: f32[16,128], index: 0, kind: input, shape index: {}, may-alias: {0,2}]
  %s1 = inlined_call_operand.vmem [shape: f32[16,128], index: 1, kind: input, shape index: {}]
  %s2 = inlined_call_operand.hbm [shape: f32[16,128], index: 2, kind: output, shape index: {}, may-alias: {0,2}]
  %s3 = sld [smem:[#allocation0]]
  $region45: #{tpu_custom_call.1} parent=0
    _
  %s5 = ssub.s32 1, %s3
  %s6 = scalar_select 0, %s5, %s3
  $region1: #{tpu_custom_call.1} parent=0
    #allocation2 [shape = 'u8[8192]{0}', space=vmem, size = 0x2000, scoped, tag = 'input window, operand 0']
    #allocation3 [shape = 's32[2]{0}', space=sflag, size = 0x8, scoped, tag = 'scoped memory for tpu_custom_call.1']
    #allocation4 [shape = 's32[2]{0}', space=sflag, size = 0x8, scoped, tag = 'scoped memory for tpu_custom_call.1']
    #allocation5 [shape = 'u8[8192]{0}', space=vmem, size = 0x2000, scoped, tag = 'output window, operand 0']
    %7 = vsyncpa [#allocation3], 0
    %s8 = scalar_lea.sflag [#allocation3], 1
    %9 = vsyncpa %s8, 0
    %10 = vsyncpa [#allocation4], 0
    %s11 = scalar_lea.sflag [#allocation4], 1
    %12 = vsyncpa %s11, 0
    loop: start=0, step=1, limit=4
    $region2: #{tpu_custom_call.1} parent=1 // loop_pre_header
      _
    $region3: #{tpu_custom_call.1} parent=1 // loop_header
      %s14 = sphi 0, %s18
      %p15 = scmp.ge.s32.totalorder %s14, 4
      %s24 = sphi 0, %s26
      %s27 = sphi 0, %s24
      %s28 = sphi 0, %s27
      %s44 = sphi 0, %s28
      %s50 = sphi 0, %s52
      %s53 = sphi 0, %s50
      %s54 = sphi 0, %s53
      %s70 = sphi 0, %s54
      %s76 = sphi 0, %s78
      %s79 = sphi 0, %s76
      %s80 = sphi 0, %s79
      %s96 = sphi 0, %s80
    $region4: #{tpu_custom_call.1} parent=1 // loop_header_branch
      %17 = sbr.rel (%p15) target = $region8
    $region5: #{tpu_custom_call.1} parent=1 // loop_body
      %s19 = ssub.s32 %s14, 1
      %s20 = ssub.s32 %s14, 2
      %s21 = sadd.s32 %s14, 1
      %s22 = ssub.s32 %s14, %s21
      %p23 = scmp.eq.s32.totalorder %s22, 0
      %s25 = sadd.s32 %s24, 1
      %s26 = scalar_select %p23, %s24, %s25
      %p29 = pneg %p23
      %p30 = scmp.eq.s32.totalorder %s14, 1
      %p31 = por %p29, %p30
      %p32 = scmp.ne.s32.totalorder %s24, %s27
      %p33 = scmp.eq.s32.totalorder %s14, 0
      %p34 = por %p32, %p33
      %p35 = scmp.ne.s32.totalorder %s24, %s27
      %p36 = scmp.eq.s32.totalorder %s19, 1
      %p37 = por %p35, %p36
      %p38 = scmp.ne.s32.totalorder %s27, %s28
      %p39 = scmp.eq.s32.totalorder %s19, 0
      %p40 = por %p38, %p39
      %p41 = scmp.ne.s32.totalorder %s27, %s28
      %p42 = scmp.eq.s32.totalorder %s20, 1
      %p43 = por %p41, %p42
      %p45 = scmp.ne.s32.totalorder %s28, %s44
      %p46 = scmp.eq.s32.totalorder %s20, 0
      %p47 = por %p45, %p46
      %s48 = ssub.s32 %s14, %s21
      %p49 = scmp.eq.s32.totalorder %s48, 0
      %s51 = sadd.s32 %s50, 1
      %s52 = scalar_select %p49, %s50, %s51
      %p55 = pneg %p49
      %p56 = scmp.eq.s32.totalorder %s14, 1
      %p57 = por %p55, %p56
      %p58 = scmp.ne.s32.totalorder %s50, %s53
      %p59 = scmp.eq.s32.totalorder %s14, 0
      %p60 = por %p58, %p59
      %p61 = scmp.ne.s32.totalorder %s50, %s53
      %p62 = scmp.eq.s32.totalorder %s19, 1
      %p63 = por %p61, %p62
      %p64 = scmp.ne.s32.totalorder %s53, %s54
      %p65 = scmp.eq.s32.totalorder %s19, 0
      %p66 = por %p64, %p65
      %p67 = scmp.ne.s32.totalorder %s53, %s54
      %p68 = scmp.eq.s32.totalorder %s20, 1
      %p69 = por %p67, %p68
      %p71 = scmp.ne.s32.totalorder %s54, %s70
      %p72 = scmp.eq.s32.totalorder %s20, 0
      %p73 = por %p71, %p72
      %s74 = ssub.s32 %s14, %s21
      %p75 = scmp.eq.s32.totalorder %s74, 0
      %s77 = sadd.s32 %s76, 1
      %s78 = scalar_select %p75, %s76, %s77
      %p81 = pneg %p75
      %p82 = scmp.eq.s32.totalorder %s14, 1
      %p83 = por %p81, %p82
      %p84 = scmp.ne.s32.totalorder %s76, %s79
      %p85 = scmp.eq.s32.totalorder %s14, 0
      %p86 = por %p84, %p85
      %p87 = scmp.ne.s32.totalorder %s76, %s79
      %p88 = scmp.eq.s32.totalorder %s19, 1
      %p89 = por %p87, %p88
      %p90 = scmp.ne.s32.totalorder %s79, %s80
      %p91 = scmp.eq.s32.totalorder %s19, 0
      %p92 = por %p90, %p91
      %p93 = scmp.ne.s32.totalorder %s79, %s80
      %p94 = scmp.eq.s32.totalorder %s20, 1
      %p95 = por %p93, %p94
      %p97 = scmp.ne.s32.totalorder %s80, %s96
      %p98 = scmp.eq.s32.totalorder %s20, 0
      %p99 = por %p97, %p98
      %p100 = scmp.le.s32.totalorder 1, %s14
      %p101 = scmp.lt.s32.totalorder %s14, 3
      %p102 = pnand %p100, %p101
      %p103 = pneg %p102
      // Predicated region
      $region9: #{tpu_custom_call.1} parent=5 // pred_check
        _
      $region10: #{tpu_custom_call.1} parent=5 // pred_check_branch
        %105 = sbr.rel (%p102) target = $region12
      $region11: #{tpu_custom_call.1} parent=5 // pred_region
        %s106 = ssub.s32 %s14, 1
      $region12: #{tpu_custom_call.1} parent=5 // pred_fallthru
        _
      %p107 = scmp.lt.s32.totalorder %s14, 2
      // Predicated region
      $region13: #{tpu_custom_call.1} parent=5 // pred_check
        %p108 = pneg %p107
      $region14: #{tpu_custom_call.1} parent=5 // pred_check_branch
        %110 = sbr.rel (%p108) target = $region16
      $region15: #{tpu_custom_call.1} parent=5 // pred_region
        // Predicated region
        $region17: #{tpu_custom_call.1} parent=15 // pred_check
          %p111 = pneg %p34
        $region18: #{tpu_custom_call.1} parent=15 // pred_check_branch
          %113 = sbr.rel (%p111) target = $region20
        $region19: #{tpu_custom_call.1} parent=15 // pred_region
          %s114 = sand.u32 %s24, 1
          %s115 = scalar_lea.sflag [#allocation3], %s114
          %s116 = sand.u32 %s24, 1
          %s117 = smul.addr %s116, 8
          %s118 = scalar_lea.vmem [#allocation2], %s117
          %s120 = ssub.s32 128, 128
          %121 = vsyncadd %s115, %s120
          %s122 = smul.addr %s14, 128
          %s123 = scalar_lea.hbm %s0, %s122
          %s125 = sshll.u32 %s118, 4
          %s126 = int_to_ptr.vmem [resolvable:$true] %s125
          %128 = dma.hbm_to_vmem [thread:$0]  %s123, 128, %s126, %s115
        $region20: #{tpu_custom_call.1} parent=15 // pred_fallthru
          _
        // Predicated region
        $region21: #{tpu_custom_call.1} parent=15 // pred_check
          %p129 = pneg %p60
        $region22: #{tpu_custom_call.1} parent=15 // pred_check_branch
          %131 = sbr.rel (%p129) target = $region24
        $region23: #{tpu_custom_call.1} parent=15 // pred_region
          %p132 = scmp.lt.s32.totalorder %s14, 1
          %s133 = scalar_select %p132, %s14, 1
          %s134 = smul.addr %s133, 8
          %s135 = scalar_lea.vmem %s1, %s134
        $region24: #{tpu_custom_call.1} parent=15 // pred_fallthru
          _
      $region16: #{tpu_custom_call.1} parent=5 // pred_fallthru
        _
      %p136 = scmp.le.s32.totalorder 1, %s14
      %p137 = scmp.lt.s32.totalorder %s14, 3
      %p138 = pnand %p136, %p137
      %p139 = pneg %p138
      // Predicated region
      $region25: #{tpu_custom_call.1} parent=5 // pred_check
        _
      $region26: #{tpu_custom_call.1} parent=5 // pred_check_branch
        %141 = sbr.rel (%p138) target = $region28
      $region27: #{tpu_custom_call.1} parent=5 // pred_region
        %s142 = ssub.s32 %s14, 1
        %s143 = sand.u32 %s27, 1
        %s144 = scalar_lea.sflag [#allocation3], %s143
        %s145 = sand.u32 %s27, 1
        %s146 = smul.addr %s145, 8
        %s147 = scalar_lea.vmem [#allocation2], %s146
        // Predicated region
        $region29: #{tpu_custom_call.1} parent=27 // pred_check
          %p148 = pneg %p40
        $region30: #{tpu_custom_call.1} parent=27 // pred_check_branch
          %150 = sbr.rel (%p148) target = $region32
        $region31: #{tpu_custom_call.1} parent=27 // pred_region
          %151 = dma.done %s144, 128
        $region32: #{tpu_custom_call.1} parent=27 // pred_fallthru
          _
        %s152 = sand.u32 %s27, 1
        %s153 = scalar_lea.sflag [#allocation3], %s152
        %s154 = sand.u32 %s27, 1
        %s155 = smul.addr %s154, 8
        %s156 = scalar_lea.vmem [#allocation2], %s155
        %p157 = pneg %p40
        %p158 = pneg %p37
        %p159 = scmp.lt.s32.totalorder %s19, 1
        %s160 = scalar_select %p159, %s19, 1
        %s161 = smul.addr %s160, 8
        %s162 = scalar_lea.vmem %s1, %s161
        %p163 = pneg %p66
        %p164 = pneg %p63
        %p165 = pneg %p92
        %p166 = pneg %p89
        %s167 = sand.u32 %s79, 1
        %s168 = scalar_lea.sflag [#allocation4], %s167
        %s169 = sand.u32 %s79, 1
        %s170 = smul.addr %s169, 8
        %s171 = scalar_lea.vmem [#allocation5], %s170
        %p172 = scmp.lt.s32.totalorder %s19, 1
        %s173 = scalar_select %p172, %s19, 1
        %s174 = smul.addr %s173, 8
        %s175 = scalar_lea.vmem %s1, %s174
        %v176 = vld [vmem:[%s147] sm:$0xff]
        %v177 = vld [vmem:[%s175] sm:$0xff]
        %v178 = vadd.f32 %v176, %v177
        %v179 = vmax.f32 %v178, 0.0
        %180 = vst [vmem:[%s171] sm:$0xff] %v179
        %s181 = sand.u32 %s79, 1
        %s182 = scalar_lea.sflag [#allocation4], %s181
        %s183 = sand.u32 %s79, 1
        %s184 = smul.addr %s183, 8
        %s185 = scalar_lea.vmem [#allocation5], %s184
        // Predicated region
        $region33: #{tpu_custom_call.1} parent=27 // pred_check
          %p186 = pneg %p89
        $region34: #{tpu_custom_call.1} parent=27 // pred_check_branch
          %188 = sbr.rel (%p186) target = $region36
        $region35: #{tpu_custom_call.1} parent=27 // pred_region
          %s190 = ssub.s32 128, 128
          %191 = vsyncadd %s182, %s190
          %s192 = smul.addr %s19, 128
          %s193 = scalar_lea.hbm %s2, %s192
          %s195 = sshll.u32 %s185, 4
          %s196 = int_to_ptr.vmem [resolvable:$true] %s195
          %198 = dma.vmem_to_hbm [thread:$0]  %s196, 128, %s193, %s182
        $region36: #{tpu_custom_call.1} parent=27 // pred_fallthru
          _
      $region28: #{tpu_custom_call.1} parent=5 // pred_fallthru
        _
      %p199 = scmp.le.s32.totalorder 2, %s14
      // Predicated region
      $region37: #{tpu_custom_call.1} parent=5 // pred_check
        %p200 = pneg %p199
      $region38: #{tpu_custom_call.1} parent=5 // pred_check_branch
        %202 = sbr.rel (%p200) target = $region40
      $region39: #{tpu_custom_call.1} parent=5 // pred_region
        %s203 = ssub.s32 %s14, 2
        // Predicated region
        $region41: #{tpu_custom_call.1} parent=39 // pred_check
          %p204 = pneg %p95
        $region42: #{tpu_custom_call.1} parent=39 // pred_check_branch
          %206 = sbr.rel (%p204) target = $region44
        $region43: #{tpu_custom_call.1} parent=39 // pred_region
          %s207 = sand.u32 %s80, 1
          %s208 = scalar_lea.sflag [#allocation4], %s207
          %s209 = sand.u32 %s80, 1
          %s210 = smul.addr %s209, 8
          %s211 = scalar_lea.vmem [#allocation5], %s210
          %212 = dma.done %s208, 128
        $region44: #{tpu_custom_call.1} parent=39 // pred_fallthru
          _
      $region40: #{tpu_custom_call.1} parent=5 // pred_fallthru
        _
    $region6: #{tpu_custom_call.1} parent=1 // loop_footer
      %s18 = sadd.s32 1, %s14
    $region7: #{tpu_custom_call.1} parent=1 // loop_footer_branch
      %13 = sbr.rel target = $region3
    $region8: #{tpu_custom_call.1} parent=1 // loop_exit
      _
    %213 = vsyncpa [#allocation3], 1
    %s214 = scalar_lea.sflag [#allocation3], 1
    %215 = vsyncpa %s214, 1
    %216 = vsyncpa [#allocation4], 1
    %s217 = scalar_lea.sflag [#allocation4], 1
    %218 = vsyncpa %s217, 1

</llo_original>
